<compile_context>
chip_gen: v6e
topology: v6e:2x2x1
jax: 0.10.0
libtpu: 0.0.40
codegen_flags: <defaults>
</compile_context>

<pallas_src>
import functools

import jax
import jax.numpy as jnp
from jax import lax
from jax.experimental import pallas as pl
from jax.experimental.pallas import tpu as pltpu


def _round_up(x, m):
    return ((x + m - 1) // m) * m


def _net_kernel(x_ref, wt_ref, spk_ref, mem_rec_ref, cur_sc,
                *, T, B, B_pad, N_out, N_out_pad, beta, threshold,
                reset_mechanism):
    # ---- Hoisted feed-forward matmul (MXU, bf16 in / f32 accumulate) ------
    # x_ref: (T*B_pad, N_in_pad) bf16, wt_ref: (N_in_pad, N_out_pad) bf16.
    cur_sc[...] = jnp.dot(x_ref[...], wt_ref[...],
                          preferred_element_type=jnp.float32)

    # ---- Sequential LIF scan (VPU, f32) ------------------------------------
    mem0 = jnp.zeros((B_pad, N_out_pad), jnp.float32)
    alive0 = jnp.ones((B_pad, N_out_pad), jnp.float32)  # 1.0 until first spike

    def step(t, carry):
        mem_prev, alive = carry
        row0 = pl.multiple_of(t * B_pad, B_pad)          # aligned f32 load
        cur = cur_sc[pl.ds(row0, B_pad), :]              # (B_pad, N_out_pad)

        reset = (mem_prev > threshold).astype(jnp.float32)
        base = beta * mem_prev + cur
        if reset_mechanism == "subtract":
            mem_new = base - reset * threshold
        elif reset_mechanism == "zero":
            mem_new = base * (1.0 - reset)
        else:  # "none"
            mem_new = base
        spk = (mem_new > threshold).astype(jnp.float32)

        # Torch early-exit: once any valid neuron has spiked, all remaining
        # outputs are zero.  `alive` is a uniform 0/1 vreg mask carried across
        # steps; it multiplies the stores, keeping everything on the vector
        # datapath (no SMEM flag / branch on the critical path).
        spk_out = spk * alive
        mem_out = mem_new * alive

        # Store only the true (B, N_out) region (masked stores, but 8-16x
        # fewer HBM bytes than writing the padded slab at these sizes).
        spk_valid = spk_out[:B, :N_out]
        mem_valid = mem_out[:B, :N_out]
        spk_ref[t] = spk_valid.astype(spk_ref.dtype)
        mem_rec_ref[t] = mem_valid.astype(mem_rec_ref.dtype)

        # Any-spike reduction restricted to the VALID region, so padded
        # lanes/rows can never trip the early exit (correct even if the user
        # passes threshold <= 0).
        any_spk = jnp.max(spk_valid)                     # exactly 0.0 or 1.0
        alive_new = alive * (1.0 - any_spk)
        return (mem_new, alive_new)

    # Capped unroll: keeps vreg pressure bounded if T grows.
    lax.fori_loop(0, T, step, (mem0, alive0), unroll=max(1, min(T, 8)))


def net_forward(x, w, *, beta, threshold, reset_mechanism="subtract"):
    """x: [T, B, N_in] float; w: [N_out, N_in] float (PyTorch Linear layout).

    Returns (spk_rec, mem_rec), each [T, B, N_out] float32.
    """
    if reset_mechanism not in ("subtract", "zero", "none"):
        raise ValueError(f"unknown reset_mechanism: {reset_mechanism!r}")

    T, B, N_in = x.shape
    N_out = w.shape[0]

    # Pad matmul operands to the (8, 128) grain; bf16 = native MXU rate.
    B_pad = _round_up(max(B, 8), 8)
    N_in_pad = _round_up(max(N_in, 128), 128)
    N_out_pad = _round_up(max(N_out, 128), 128)

    # Zero padding => padded rows/lanes get cur == 0 and never affect results
    # (and the early-exit reduction is restricted to the valid region anyway).
    x_p = jnp.zeros((T, B_pad, N_in_pad), jnp.bfloat16)
    x_p = x_p.at[:, :B, :N_in].set(x.astype(jnp.bfloat16))
    x_p = x_p.reshape(T * B_pad, N_in_pad)               # lane-dense 2-D slab

    # Pre-transpose the weight once in the wrapper (lane-contiguous MXU RHS).
    wt_p = jnp.zeros((N_in_pad, N_out_pad), jnp.bfloat16)
    wt_p = wt_p.at[:N_in, :N_out].set(w.T.astype(jnp.bfloat16))

    kernel = functools.partial(
        _net_kernel,
        T=T, B=B, B_pad=B_pad, N_out=N_out, N_out_pad=N_out_pad,
        beta=float(beta), threshold=float(threshold),
        reset_mechanism=reset_mechanism)

    out_shapes = (
        jax.ShapeDtypeStruct((T, B, N_out), jnp.float32),   # spk_rec
        jax.ShapeDtypeStruct((T, B, N_out), jnp.float32),   # mem_rec
    )

    # Explicit VMEM budget: actual footprint (incl. 2x pipelining headroom for
    # the in/out blocks + the f32 current scratch), clamped well under v7x's
    # 64 MiB physical VMEM.
    out_tile_bytes = T * _round_up(B, 8) * _round_up(N_out, 128) * 4
    in_bytes = x_p.size * 2 + wt_p.size * 2
    cur_bytes = T * B_pad * N_out_pad * 4
    vmem_limit = int(min(48 * 2**20,
                         max(8 * 2**20,
                             2 * (in_bytes + 2 * out_tile_bytes) + cur_bytes)))

    spk, mem = pl.pallas_call(
        kernel,
        out_shape=out_shapes,
        grid=(1,),  # whole (toy-sized) problem resident; loops live in-kernel
        in_specs=[
            pl.BlockSpec((T * B_pad, N_in_pad), lambda i: (0, 0)),
            pl.BlockSpec((N_in_pad, N_out_pad), lambda i: (0, 0)),
        ],
        out_specs=(
            pl.BlockSpec((T, B, N_out), lambda i: (0, 0, 0)),
            pl.BlockSpec((T, B, N_out), lambda i: (0, 0, 0)),
        ),
        scratch_shapes=[
            pltpu.VMEM((T * B_pad, N_out_pad), jnp.float32),  # hoisted currents
        ],
        compiler_params=pltpu.CompilerParams(
            dimension_semantics=("arbitrary",),
            vmem_limit_bytes=vmem_limit,
        ),
    )(x_p, wt_p)

    # TODO(synk): for large T/B/N (esp. v7x's 64 MiB VMEM) move T to a
    # streaming grid axis carrying (mem, alive) across an 'arbitrary' time
    # dimension and split the hoisted matmul across both v7x TensorCores;
    # unnecessary at these toy sizes.
    return spk, mem


def _net_forward_ref(x, w, *, beta, threshold, reset_mechanism="subtract"):
    """Pure-JAX reference mirroring the PyTorch loop (incl. early break).

    Uses the same bf16-rounded matmul operands as the kernel so membrane
    values (and hence spike timing) match to f32-accumulation accuracy.
    """
    T, B, _ = x.shape
    N_out = w.shape[0]
    xb = x.astype(jnp.bfloat16).astype(jnp.float32)
    wtb = w.T.astype(jnp.bfloat16).astype(jnp.float32)
    mem = jnp.zeros((B, N_out), jnp.float32)
    zeros = jnp.zeros((B, N_out), jnp.float32)
    spk_rec, mem_rec = [], []
    done = False
    for t in range(T):
        if done:
            spk_rec.append(zeros)
            mem_rec.append(zeros)
            continue
        cur = xb[t] @ wtb
        reset = (mem > threshold).astype(jnp.float32)
        base = beta * mem + cur
        if reset_mechanism == "subtract":
            mem_new = base - reset * threshold
        elif reset_mechanism == "zero":
            mem_new = base * (1.0 - reset)
        else:  # "none"
            mem_new = base
        spk = (mem_new > threshold).astype(jnp.float32)
        spk_rec.append(spk)
        mem_rec.append(mem_new)
        mem = mem_new
        if bool(jnp.any(spk > 0)):
            done = True
    return jnp.stack(spk_rec), jnp.stack(mem_rec)


if __name__ == "__main__":
    # Small shapes consistent with the module.
    T, B = 8, 4
    num_input, num_output = 32, 16
    beta, threshold = 0.9, 1.0
    reset_mechanism = "subtract"

    key = jax.random.PRNGKey(0)
    k_w, k_x = jax.random.split(key)

    # torch.nn.init.uniform_(fc1.weight, a=0.0, b=1.0)
    w = jax.random.uniform(k_w, (num_output, num_input), dtype=jnp.float32,
                           minval=0.0, maxval=1.0)
    # Deterministic example input [T, B, num_input].
    x = jax.random.uniform(k_x, (T, B, num_input), dtype=jnp.float32,
                           minval=0.0, maxval=0.1)

    spk_rec, mem_rec = net_forward(x, w, beta=beta, threshold=threshold,
                                   reset_mechanism=reset_mechanism)
    jax.block_until_ready((spk_rec, mem_rec))

    assert spk_rec.shape == (T, B, num_output)
    assert mem_rec.shape == (T, B, num_output)

    # Sanity check against the pure-JAX reference (same bf16 operand rounding).
    spk_ref, mem_ref = _net_forward_ref(x, w, beta=beta, threshold=threshold,
                                        reset_mechanism=reset_mechanism)
    assert jnp.allclose(spk_rec, spk_ref, atol=1e-5), "spk mismatch vs reference"
    assert jnp.allclose(mem_rec, mem_ref, atol=1e-4), "mem mismatch vs reference"

    print("KERNEL_OK")
</pallas_src>

<mosaic_0001>
module attributes {stable_mosaic.version = 11 : i64} {
  func.func @_net_kernel(%arg0: i32, %arg1: memref<64x128xbf16, #tpu.memory_space<vmem>>, %arg2: memref<128x128xbf16, #tpu.memory_space<vmem>>, %arg3: memref<8x4x16xf32, #tpu.memory_space<vmem>>, %arg4: memref<8x4x16xf32, #tpu.memory_space<vmem>>, %arg5: memref<64x128xf32, #tpu.memory_space<vmem>>) attributes {dimension_semantics = [#tpu.dimension_semantics<arbitrary>], iteration_bounds = array<i64: 1>, scalar_prefetch = 0 : i64, scratch_operands = 1 : i64, tpu.core_type = #tpu.core_type<tc>, window_params = [{pipeline_mode = #tpu.pipeline_mode<synchronous>, transform_indices = @transform_0, window_bounds = array<i64: 64, 128>}, {pipeline_mode = #tpu.pipeline_mode<synchronous>, transform_indices = @transform_1, window_bounds = array<i64: 128, 128>}, {pipeline_mode = #tpu.pipeline_mode<synchronous>, transform_indices = @transform_2, window_bounds = array<i64: 8, 4, 16>}, {pipeline_mode = #tpu.pipeline_mode<synchronous>, transform_indices = @transform_3, window_bounds = array<i64: 8, 4, 16>}]} {
    %c0 = arith.constant 0 : index
    %c0_0 = arith.constant 0 : index
    %0 = vector.load %arg1[%c0, %c0_0] : memref<64x128xbf16, #tpu.memory_space<vmem>>, vector<64x128xbf16>
    %c0_1 = arith.constant 0 : index
    %c0_2 = arith.constant 0 : index
    %1 = vector.load %arg2[%c0_1, %c0_2] : memref<128x128xbf16, #tpu.memory_space<vmem>>, vector<128x128xbf16>
    %cst = arith.constant dense<0.000000e+00> : vector<64x128xf32>
    %2 = tpu.matmul %0, %1, %cst {dimension_numbers = #tpu.dot_dimension_numbers<[1], [0], [0], [1], [0, 0, 1, 1], [], []>} : vector<64x128xbf16>, vector<128x128xbf16>, vector<64x128xf32> -> vector<64x128xf32>
    %c0_3 = arith.constant 0 : index
    %c0_4 = arith.constant 0 : index
    %3 = vector.load %arg5[%c0_3, %c0_4] : memref<64x128xf32, #tpu.memory_space<vmem>>, vector<64x128xf32>
    tpu.vector_store %arg5[%c0_3, %c0_4], %2 {strides = array<i32>} : memref<64x128xf32, #tpu.memory_space<vmem>>, vector<64x128xf32>,
    %cst_5 = arith.constant 0.000000e+00 : f32
    %4 = vector.broadcast %cst_5 : f32 to vector<8x128xf32>
    %cst_6 = arith.constant 1.000000e+00 : f32
    %5 = vector.broadcast %cst_6 : f32 to vector<8x128xf32>
    %c0_i32 = arith.constant 0 : i32
    %c8_i32 = arith.constant 8 : i32
    %6 = arith.muli %c0_i32, %c8_i32 : i32
    %7 = tpu.assume_multiple %6, 8 : i32
    %8 = arith.index_cast %7 : i32 to index
    %c0_7 = arith.constant 0 : index
    %9 = vector.load %arg5[%8, %c0_7] : memref<64x128xf32, #tpu.memory_space<vmem>>, vector<8x128xf32>
    %cst_8 = arith.constant 1.000000e+00 : f32
    %10 = vector.broadcast %cst_8 : f32 to vector<8x128xf32>
    %11 = arith.cmpf ogt, %4, %10 : vector<8x128xf32>
    %12 = arith.extui %11 : vector<8x128xi1> to vector<8x128xi32>
    %13 = arith.sitofp %12 : vector<8x128xi32> to vector<8x128xf32>
    %cst_9 = arith.constant 0.899999976 : f32
    %14 = vector.broadcast %cst_9 : f32 to vector<8x128xf32>
    %15 = arith.mulf %14, %4 : vector<8x128xf32>
    %16 = arith.addf %15, %9 : vector<8x128xf32>
    %cst_10 = arith.constant 1.000000e+00 : f32
    %17 = vector.broadcast %cst_10 : f32 to vector<8x128xf32>
    %18 = arith.mulf %13, %17 : vector<8x128xf32>
    %19 = arith.subf %16, %18 : vector<8x128xf32>
    %cst_11 = arith.constant 1.000000e+00 : f32
    %20 = vector.broadcast %cst_11 : f32 to vector<8x128xf32>
    %21 = arith.cmpf ogt, %19, %20 : vector<8x128xf32>
    %22 = arith.extui %21 : vector<8x128xi1> to vector<8x128xi32>
    %23 = arith.sitofp %22 : vector<8x128xi32> to vector<8x128xf32>
    %24 = arith.mulf %23, %5 : vector<8x128xf32>
    %25 = arith.mulf %19, %5 : vector<8x128xf32>
    %26 = vector.extract_strided_slice %24 {offsets = [0, 0], sizes = [4, 16], strides = [1, 1]} : vector<8x128xf32> to vector<4x16xf32>
    %27 = vector.extract_strided_slice %25 {offsets = [0, 0], sizes = [4, 16], strides = [1, 1]} : vector<8x128xf32> to vector<4x16xf32>
    %28 = arith.index_cast %c0_i32 : i32 to index
    %c0_12 = arith.constant 0 : index
    %c0_13 = arith.constant 0 : index
    %29 = vector.load %arg3[%28, %c0_12, %c0_13] : memref<8x4x16xf32, #tpu.memory_space<vmem>>, vector<1x4x16xf32>
    %30 = vector.shape_cast %29 : vector<1x4x16xf32> to vector<4x16xf32>
    %31 = vector.shape_cast %26 : vector<4x16xf32> to vector<1x4x16xf32>
    tpu.vector_store %arg3[%28, %c0_12, %c0_13], %31 {strides = array<i32>} : memref<8x4x16xf32, #tpu.memory_space<vmem>>, vector<1x4x16xf32>,
    %32 = arith.index_cast %c0_i32 : i32 to index
    %c0_14 = arith.constant 0 : index
    %c0_15 = arith.constant 0 : index
    %33 = vector.load %arg4[%32, %c0_14, %c0_15] : memref<8x4x16xf32, #tpu.memory_space<vmem>>, vector<1x4x16xf32>
    %34 = vector.shape_cast %33 : vector<1x4x16xf32> to vector<4x16xf32>
    %35 = vector.shape_cast %27 : vector<4x16xf32> to vector<1x4x16xf32>
    tpu.vector_store %arg4[%32, %c0_14, %c0_15], %35 {strides = array<i32>} : memref<8x4x16xf32, #tpu.memory_space<vmem>>, vector<1x4x16xf32>,
    %36 = vector.shape_cast %26 : vector<4x16xf32> to vector<1x4x16xf32>
    %cst_16 = arith.constant dense<0xFF800000> : vector<1xf32>
    %37 = vector.multi_reduction <maximumf>, %36, %cst_16 [1, 2] : vector<1x4x16xf32> to vector<1xf32>
    %38 = vector.shape_cast %37 : vector<1xf32> to vector<1x1x1xf32>
    %39 = vector.extract %38[0, 0, 0] : f32 from vector<1x1x1xf32>
    %cst_17 = arith.constant 1.000000e+00 : f32
    %40 = arith.subf %cst_17, %39 : f32
    %41 = vector.broadcast %40 : f32 to vector<8x128xf32>
    %42 = arith.mulf %5, %41 : vector<8x128xf32>
    %c1_i32 = arith.constant 1 : i32
    %c8_i32_18 = arith.constant 8 : i32
    %43 = arith.muli %c1_i32, %c8_i32_18 : i32
    %44 = tpu.assume_multiple %43, 8 : i32
    %45 = arith.index_cast %44 : i32 to index
    %c0_19 = arith.constant 0 : index
    %46 = vector.load %arg5[%45, %c0_19] : memref<64x128xf32, #tpu.memory_space<vmem>>, vector<8x128xf32>
    %cst_20 = arith.constant 1.000000e+00 : f32
    %47 = vector.broadcast %cst_20 : f32 to vector<8x128xf32>
    %48 = arith.cmpf ogt, %19, %47 : vector<8x128xf32>
    %49 = arith.extui %48 : vector<8x128xi1> to vector<8x128xi32>
    %50 = arith.sitofp %49 : vector<8x128xi32> to vector<8x128xf32>
    %cst_21 = arith.constant 0.899999976 : f32
    %51 = vector.broadcast %cst_21 : f32 to vector<8x128xf32>
    %52 = arith.mulf %51, %19 : vector<8x128xf32>
    %53 = arith.addf %52, %46 : vector<8x128xf32>
    %cst_22 = arith.constant 1.000000e+00 : f32
    %54 = vector.broadcast %cst_22 : f32 to vector<8x128xf32>
    %55 = arith.mulf %50, %54 : vector<8x128xf32>
    %56 = arith.subf %53, %55 : vector<8x128xf32>
    %cst_23 = arith.constant 1.000000e+00 : f32
    %57 = vector.broadcast %cst_23 : f32 to vector<8x128xf32>
    %58 = arith.cmpf ogt, %56, %57 : vector<8x128xf32>
    %59 = arith.extui %58 : vector<8x128xi1> to vector<8x128xi32>
    %60 = arith.sitofp %59 : vector<8x128xi32> to vector<8x128xf32>
    %61 = arith.mulf %60, %42 : vector<8x128xf32>
    %62 = arith.mulf %56, %42 : vector<8x128xf32>
    %63 = vector.extract_strided_slice %61 {offsets = [0, 0], sizes = [4, 16], strides = [1, 1]} : vector<8x128xf32> to vector<4x16xf32>
    %64 = vector.extract_strided_slice %62 {offsets = [0, 0], sizes = [4, 16], strides = [1, 1]} : vector<8x128xf32> to vector<4x16xf32>
    %65 = arith.index_cast %c1_i32 : i32 to index
    %c0_24 = arith.constant 0 : index
    %c0_25 = arith.constant 0 : index
    %66 = vector.load %arg3[%65, %c0_24, %c0_25] : memref<8x4x16xf32, #tpu.memory_space<vmem>>, vector<1x4x16xf32>
    %67 = vector.shape_cast %66 : vector<1x4x16xf32> to vector<4x16xf32>
    %68 = vector.shape_cast %63 : vector<4x16xf32> to vector<1x4x16xf32>
    tpu.vector_store %arg3[%65, %c0_24, %c0_25], %68 {strides = array<i32>} : memref<8x4x16xf32, #tpu.memory_space<vmem>>, vector<1x4x16xf32>,
    %69 = arith.index_cast %c1_i32 : i32 to index
    %c0_26 = arith.constant 0 : index
    %c0_27 = arith.constant 0 : index
    %70 = vector.load %arg4[%69, %c0_26, %c0_27] : memref<8x4x16xf32, #tpu.memory_space<vmem>>, vector<1x4x16xf32>
    %71 = vector.shape_cast %70 : vector<1x4x16xf32> to vector<4x16xf32>
    %72 = vector.shape_cast %64 : vector<4x16xf32> to vector<1x4x16xf32>
    tpu.vector_store %arg4[%69, %c0_26, %c0_27], %72 {strides = array<i32>} : memref<8x4x16xf32, #tpu.memory_space<vmem>>, vector<1x4x16xf32>,
    %73 = vector.shape_cast %63 : vector<4x16xf32> to vector<1x4x16xf32>
    %cst_28 = arith.constant dense<0xFF800000> : vector<1xf32>
    %74 = vector.multi_reduction <maximumf>, %73, %cst_28 [1, 2] : vector<1x4x16xf32> to vector<1xf32>
    %75 = vector.shape_cast %74 : vector<1xf32> to vector<1x1x1xf32>
    %76 = vector.extract %75[0, 0, 0] : f32 from vector<1x1x1xf32>
    %cst_29 = arith.constant 1.000000e+00 : f32
    %77 = arith.subf %cst_29, %76 : f32
    %78 = vector.broadcast %77 : f32 to vector<8x128xf32>
    %79 = arith.mulf %42, %78 : vector<8x128xf32>
    %c2_i32 = arith.constant 2 : i32
    %c8_i32_30 = arith.constant 8 : i32
    %80 = arith.muli %c2_i32, %c8_i32_30 : i32
    %81 = tpu.assume_multiple %80, 8 : i32
    %82 = arith.index_cast %81 : i32 to index
    %c0_31 = arith.constant 0 : index
    %83 = vector.load %arg5[%82, %c0_31] : memref<64x128xf32, #tpu.memory_space<vmem>>, vector<8x128xf32>
    %cst_32 = arith.constant 1.000000e+00 : f32
    %84 = vector.broadcast %cst_32 : f32 to vector<8x128xf32>
    %85 = arith.cmpf ogt, %56, %84 : vector<8x128xf32>
    %86 = arith.extui %85 : vector<8x128xi1> to vector<8x128xi32>
    %87 = arith.sitofp %86 : vector<8x128xi32> to vector<8x128xf32>
    %cst_33 = arith.constant 0.899999976 : f32
    %88 = vector.broadcast %cst_33 : f32 to vector<8x128xf32>
    %89 = arith.mulf %88, %56 : vector<8x128xf32>
    %90 = arith.addf %89, %83 : vector<8x128xf32>
    %cst_34 = arith.constant 1.000000e+00 : f32
    %91 = vector.broadcast %cst_34 : f32 to vector<8x128xf32>
    %92 = arith.mulf %87, %91 : vector<8x128xf32>
    %93 = arith.subf %90, %92 : vector<8x128xf32>
    %cst_35 = arith.constant 1.000000e+00 : f32
    %94 = vector.broadcast %cst_35 : f32 to vector<8x128xf32>
    %95 = arith.cmpf ogt, %93, %94 : vector<8x128xf32>
    %96 = arith.extui %95 : vector<8x128xi1> to vector<8x128xi32>
    %97 = arith.sitofp %96 : vector<8x128xi32> to vector<8x128xf32>
    %98 = arith.mulf %97, %79 : vector<8x128xf32>
    %99 = arith.mulf %93, %79 : vector<8x128xf32>
    %100 = vector.extract_strided_slice %98 {offsets = [0, 0], sizes = [4, 16], strides = [1, 1]} : vector<8x128xf32> to vector<4x16xf32>
    %101 = vector.extract_strided_slice %99 {offsets = [0, 0], sizes = [4, 16], strides = [1, 1]} : vector<8x128xf32> to vector<4x16xf32>
    %102 = arith.index_cast %c2_i32 : i32 to index
    %c0_36 = arith.constant 0 : index
    %c0_37 = arith.constant 0 : index
    %103 = vector.load %arg3[%102, %c0_36, %c0_37] : memref<8x4x16xf32, #tpu.memory_space<vmem>>, vector<1x4x16xf32>
    %104 = vector.shape_cast %103 : vector<1x4x16xf32> to vector<4x16xf32>
    %105 = vector.shape_cast %100 : vector<4x16xf32> to vector<1x4x16xf32>
    tpu.vector_store %arg3[%102, %c0_36, %c0_37], %105 {strides = array<i32>} : memref<8x4x16xf32, #tpu.memory_space<vmem>>, vector<1x4x16xf32>,
    %106 = arith.index_cast %c2_i32 : i32 to index
    %c0_38 = arith.constant 0 : index
    %c0_39 = arith.constant 0 : index
    %107 = vector.load %arg4[%106, %c0_38, %c0_39] : memref<8x4x16xf32, #tpu.memory_space<vmem>>, vector<1x4x16xf32>
    %108 = vector.shape_cast %107 : vector<1x4x16xf32> to vector<4x16xf32>
    %109 = vector.shape_cast %101 : vector<4x16xf32> to vector<1x4x16xf32>
    tpu.vector_store %arg4[%106, %c0_38, %c0_39], %109 {strides = array<i32>} : memref<8x4x16xf32, #tpu.memory_space<vmem>>, vector<1x4x16xf32>,
    %110 = vector.shape_cast %100 : vector<4x16xf32> to vector<1x4x16xf32>
    %cst_40 = arith.constant dense<0xFF800000> : vector<1xf32>
    %111 = vector.multi_reduction <maximumf>, %110, %cst_40 [1, 2] : vector<1x4x16xf32> to vector<1xf32>
    %112 = vector.shape_cast %111 : vector<1xf32> to vector<1x1x1xf32>
    %113 = vector.extract %112[0, 0, 0] : f32 from vector<1x1x1xf32>
    %cst_41 = arith.constant 1.000000e+00 : f32
    %114 = arith.subf %cst_41, %113 : f32
    %115 = vector.broadcast %114 : f32 to vector<8x128xf32>
    %116 = arith.mulf %79, %115 : vector<8x128xf32>
    %c3_i32 = arith.constant 3 : i32
    %c8_i32_42 = arith.constant 8 : i32
    %117 = arith.muli %c3_i32, %c8_i32_42 : i32
    %118 = tpu.assume_multiple %117, 8 : i32
    %119 = arith.index_cast %118 : i32 to index
    %c0_43 = arith.constant 0 : index
    %120 = vector.load %arg5[%119, %c0_43] : memref<64x128xf32, #tpu.memory_space<vmem>>, vector<8x128xf32>
    %cst_44 = arith.constant 1.000000e+00 : f32
    %121 = vector.broadcast %cst_44 : f32 to vector<8x128xf32>
    %122 = arith.cmpf ogt, %93, %121 : vector<8x128xf32>
    %123 = arith.extui %122 : vector<8x128xi1> to vector<8x128xi32>
    %124 = arith.sitofp %123 : vector<8x128xi32> to vector<8x128xf32>
    %cst_45 = arith.constant 0.899999976 : f32
    %125 = vector.broadcast %cst_45 : f32 to vector<8x128xf32>
    %126 = arith.mulf %125, %93 : vector<8x128xf32>
    %127 = arith.addf %126, %120 : vector<8x128xf32>
    %cst_46 = arith.constant 1.000000e+00 : f32
    %128 = vector.broadcast %cst_46 : f32 to vector<8x128xf32>
    %129 = arith.mulf %124, %128 : vector<8x128xf32>
    %130 = arith.subf %127, %129 : vector<8x128xf32>
    %cst_47 = arith.constant 1.000000e+00 : f32
    %131 = vector.broadcast %cst_47 : f32 to vector<8x128xf32>
    %132 = arith.cmpf ogt, %130, %131 : vector<8x128xf32>
    %133 = arith.extui %132 : vector<8x128xi1> to vector<8x128xi32>
    %134 = arith.sitofp %133 : vector<8x128xi32> to vector<8x128xf32>
    %135 = arith.mulf %134, %116 : vector<8x128xf32>
    %136 = arith.mulf %130, %116 : vector<8x128xf32>
    %137 = vector.extract_strided_slice %135 {offsets = [0, 0], sizes = [4, 16], strides = [1, 1]} : vector<8x128xf32> to vector<4x16xf32>
    %138 = vector.extract_strided_slice %136 {offsets = [0, 0], sizes = [4, 16], strides = [1, 1]} : vector<8x128xf32> to vector<4x16xf32>
    %139 = arith.index_cast %c3_i32 : i32 to index
    %c0_48 = arith.constant 0 : index
    %c0_49 = arith.constant 0 : index
    %140 = vector.load %arg3[%139, %c0_48, %c0_49] : memref<8x4x16xf32, #tpu.memory_space<vmem>>, vector<1x4x16xf32>
    %141 = vector.shape_cast %140 : vector<1x4x16xf32> to vector<4x16xf32>
    %142 = vector.shape_cast %137 : vector<4x16xf32> to vector<1x4x16xf32>
    tpu.vector_store %arg3[%139, %c0_48, %c0_49], %142 {strides = array<i32>} : memref<8x4x16xf32, #tpu.memory_space<vmem>>, vector<1x4x16xf32>,
    %143 = arith.index_cast %c3_i32 : i32 to index
    %c0_50 = arith.constant 0 : index
    %c0_51 = arith.constant 0 : index
    %144 = vector.load %arg4[%143, %c0_50, %c0_51] : memref<8x4x16xf32, #tpu.memory_space<vmem>>, vector<1x4x16xf32>
    %145 = vector.shape_cast %144 : vector<1x4x16xf32> to vector<4x16xf32>
    %146 = vector.shape_cast %138 : vector<4x16xf32> to vector<1x4x16xf32>
    tpu.vector_store %arg4[%143, %c0_50, %c0_51], %146 {strides = array<i32>} : memref<8x4x16xf32, #tpu.memory_space<vmem>>, vector<1x4x16xf32>,
    %147 = vector.shape_cast %137 : vector<4x16xf32> to vector<1x4x16xf32>
    %cst_52 = arith.constant dense<0xFF800000> : vector<1xf32>
    %148 = vector.multi_reduction <maximumf>, %147, %cst_52 [1, 2] : vector<1x4x16xf32> to vector<1xf32>
    %149 = vector.shape_cast %148 : vector<1xf32> to vector<1x1x1xf32>
    %150 = vector.extract %149[0, 0, 0] : f32 from vector<1x1x1xf32>
    %cst_53 = arith.constant 1.000000e+00 : f32
    %151 = arith.subf %cst_53, %150 : f32
    %152 = vector.broadcast %151 : f32 to vector<8x128xf32>
    %153 = arith.mulf %116, %152 : vector<8x128xf32>
    %c4_i32 = arith.constant 4 : i32
    %c8_i32_54 = arith.constant 8 : i32
    %154 = arith.muli %c4_i32, %c8_i32_54 : i32
    %155 = tpu.assume_multiple %154, 8 : i32
    %156 = arith.index_cast %155 : i32 to index
    %c0_55 = arith.constant 0 : index
    %157 = vector.load %arg5[%156, %c0_55] : memref<64x128xf32, #tpu.memory_space<vmem>>, vector<8x128xf32>
    %cst_56 = arith.constant 1.000000e+00 : f32
    %158 = vector.broadcast %cst_56 : f32 to vector<8x128xf32>
    %159 = arith.cmpf ogt, %130, %158 : vector<8x128xf32>
    %160 = arith.extui %159 : vector<8x128xi1> to vector<8x128xi32>
    %161 = arith.sitofp %160 : vector<8x128xi32> to vector<8x128xf32>
    %cst_57 = arith.constant 0.899999976 : f32
    %162 = vector.broadcast %cst_57 : f32 to vector<8x128xf32>
    %163 = arith.mulf %162, %130 : vector<8x128xf32>
    %164 = arith.addf %163, %157 : vector<8x128xf32>
    %cst_58 = arith.constant 1.000000e+00 : f32
    %165 = vector.broadcast %cst_58 : f32 to vector<8x128xf32>
    %166 = arith.mulf %161, %165 : vector<8x128xf32>
    %167 = arith.subf %164, %166 : vector<8x128xf32>
    %cst_59 = arith.constant 1.000000e+00 : f32
    %168 = vector.broadcast %cst_59 : f32 to vector<8x128xf32>
    %169 = arith.cmpf ogt, %167, %168 : vector<8x128xf32>
    %170 = arith.extui %169 : vector<8x128xi1> to vector<8x128xi32>
    %171 = arith.sitofp %170 : vector<8x128xi32> to vector<8x128xf32>
    %172 = arith.mulf %171, %153 : vector<8x128xf32>
    %173 = arith.mulf %167, %153 : vector<8x128xf32>
    %174 = vector.extract_strided_slice %172 {offsets = [0, 0], sizes = [4, 16], strides = [1, 1]} : vector<8x128xf32> to vector<4x16xf32>
    %175 = vector.extract_strided_slice %173 {offsets = [0, 0], sizes = [4, 16], strides = [1, 1]} : vector<8x128xf32> to vector<4x16xf32>
    %176 = arith.index_cast %c4_i32 : i32 to index
    %c0_60 = arith.constant 0 : index
    %c0_61 = arith.constant 0 : index
    %177 = vector.load %arg3[%176, %c0_60, %c0_61] : memref<8x4x16xf32, #tpu.memory_space<vmem>>, vector<1x4x16xf32>
    %178 = vector.shape_cast %177 : vector<1x4x16xf32> to vector<4x16xf32>
    %179 = vector.shape_cast %174 : vector<4x16xf32> to vector<1x4x16xf32>
    tpu.vector_store %arg3[%176, %c0_60, %c0_61], %179 {strides = array<i32>} : memref<8x4x16xf32, #tpu.memory_space<vmem>>, vector<1x4x16xf32>,
    %180 = arith.index_cast %c4_i32 : i32 to index
    %c0_62 = arith.constant 0 : index
    %c0_63 = arith.constant 0 : index
    %181 = vector.load %arg4[%180, %c0_62, %c0_63] : memref<8x4x16xf32, #tpu.memory_space<vmem>>, vector<1x4x16xf32>
    %182 = vector.shape_cast %181 : vector<1x4x16xf32> to vector<4x16xf32>
    %183 = vector.shape_cast %175 : vector<4x16xf32> to vector<1x4x16xf32>
    tpu.vector_store %arg4[%180, %c0_62, %c0_63], %183 {strides = array<i32>} : memref<8x4x16xf32, #tpu.memory_space<vmem>>, vector<1x4x16xf32>,
    %184 = vector.shape_cast %174 : vector<4x16xf32> to vector<1x4x16xf32>
    %cst_64 = arith.constant dense<0xFF800000> : vector<1xf32>
    %185 = vector.multi_reduction <maximumf>, %184, %cst_64 [1, 2] : vector<1x4x16xf32> to vector<1xf32>
    %186 = vector.shape_cast %185 : vector<1xf32> to vector<1x1x1xf32>
    %187 = vector.extract %186[0, 0, 0] : f32 from vector<1x1x1xf32>
    %cst_65 = arith.constant 1.000000e+00 : f32
    %188 = arith.subf %cst_65, %187 : f32
    %189 = vector.broadcast %188 : f32 to vector<8x128xf32>
    %190 = arith.mulf %153, %189 : vector<8x128xf32>
    %c5_i32 = arith.constant 5 : i32
    %c8_i32_66 = arith.constant 8 : i32
    %191 = arith.muli %c5_i32, %c8_i32_66 : i32
    %192 = tpu.assume_multiple %191, 8 : i32
    %193 = arith.index_cast %192 : i32 to index
    %c0_67 = arith.constant 0 : index
    %194 = vector.load %arg5[%193, %c0_67] : memref<64x128xf32, #tpu.memory_space<vmem>>, vector<8x128xf32>
    %cst_68 = arith.constant 1.000000e+00 : f32
    %195 = vector.broadcast %cst_68 : f32 to vector<8x128xf32>
    %196 = arith.cmpf ogt, %167, %195 : vector<8x128xf32>
    %197 = arith.extui %196 : vector<8x128xi1> to vector<8x128xi32>
    %198 = arith.sitofp %197 : vector<8x128xi32> to vector<8x128xf32>
    %cst_69 = arith.constant 0.899999976 : f32
    %199 = vector.broadcast %cst_69 : f32 to vector<8x128xf32>
    %200 = arith.mulf %199, %167 : vector<8x128xf32>
    %201 = arith.addf %200, %194 : vector<8x128xf32>
    %cst_70 = arith.constant 1.000000e+00 : f32
    %202 = vector.broadcast %cst_70 : f32 to vector<8x128xf32>
    %203 = arith.mulf %198, %202 : vector<8x128xf32>
    %204 = arith.subf %201, %203 : vector<8x128xf32>
    %cst_71 = arith.constant 1.000000e+00 : f32
    %205 = vector.broadcast %cst_71 : f32 to vector<8x128xf32>
    %206 = arith.cmpf ogt, %204, %205 : vector<8x128xf32>
    %207 = arith.extui %206 : vector<8x128xi1> to vector<8x128xi32>
    %208 = arith.sitofp %207 : vector<8x128xi32> to vector<8x128xf32>
    %209 = arith.mulf %208, %190 : vector<8x128xf32>
    %210 = arith.mulf %204, %190 : vector<8x128xf32>
    %211 = vector.extract_strided_slice %209 {offsets = [0, 0], sizes = [4, 16], strides = [1, 1]} : vector<8x128xf32> to vector<4x16xf32>
    %212 = vector.extract_strided_slice %210 {offsets = [0, 0], sizes = [4, 16], strides = [1, 1]} : vector<8x128xf32> to vector<4x16xf32>
    %213 = arith.index_cast %c5_i32 : i32 to index
    %c0_72 = arith.constant 0 : index
    %c0_73 = arith.constant 0 : index
    %214 = vector.load %arg3[%213, %c0_72, %c0_73] : memref<8x4x16xf32, #tpu.memory_space<vmem>>, vector<1x4x16xf32>
    %215 = vector.shape_cast %214 : vector<1x4x16xf32> to vector<4x16xf32>
    %216 = vector.shape_cast %211 : vector<4x16xf32> to vector<1x4x16xf32>
    tpu.vector_store %arg3[%213, %c0_72, %c0_73], %216 {strides = array<i32>} : memref<8x4x16xf32, #tpu.memory_space<vmem>>, vector<1x4x16xf32>,
    %217 = arith.index_cast %c5_i32 : i32 to index
    %c0_74 = arith.constant 0 : index
    %c0_75 = arith.constant 0 : index
    %218 = vector.load %arg4[%217, %c0_74, %c0_75] : memref<8x4x16xf32, #tpu.memory_space<vmem>>, vector<1x4x16xf32>
    %219 = vector.shape_cast %218 : vector<1x4x16xf32> to vector<4x16xf32>
    %220 = vector.shape_cast %212 : vector<4x16xf32> to vector<1x4x16xf32>
    tpu.vector_store %arg4[%217, %c0_74, %c0_75], %220 {strides = array<i32>} : memref<8x4x16xf32, #tpu.memory_space<vmem>>, vector<1x4x16xf32>,
    %221 = vector.shape_cast %211 : vector<4x16xf32> to vector<1x4x16xf32>
    %cst_76 = arith.constant dense<0xFF800000> : vector<1xf32>
    %222 = vector.multi_reduction <maximumf>, %221, %cst_76 [1, 2] : vector<1x4x16xf32> to vector<1xf32>
    %223 = vector.shape_cast %222 : vector<1xf32> to vector<1x1x1xf32>
    %224 = vector.extract %223[0, 0, 0] : f32 from vector<1x1x1xf32>
    %cst_77 = arith.constant 1.000000e+00 : f32
    %225 = arith.subf %cst_77, %224 : f32
    %226 = vector.broadcast %225 : f32 to vector<8x128xf32>
    %227 = arith.mulf %190, %226 : vector<8x128xf32>
    %c6_i32 = arith.constant 6 : i32
    %c8_i32_78 = arith.constant 8 : i32
    %228 = arith.muli %c6_i32, %c8_i32_78 : i32
    %229 = tpu.assume_multiple %228, 8 : i32
    %230 = arith.index_cast %229 : i32 to index
    %c0_79 = arith.constant 0 : index
    %231 = vector.load %arg5[%230, %c0_79] : memref<64x128xf32, #tpu.memory_space<vmem>>, vector<8x128xf32>
    %cst_80 = arith.constant 1.000000e+00 : f32
    %232 = vector.broadcast %cst_80 : f32 to vector<8x128xf32>
    %233 = arith.cmpf ogt, %204, %232 : vector<8x128xf32>
    %234 = arith.extui %233 : vector<8x128xi1> to vector<8x128xi32>
    %235 = arith.sitofp %234 : vector<8x128xi32> to vector<8x128xf32>
    %cst_81 = arith.constant 0.899999976 : f32
    %236 = vector.broadcast %cst_81 : f32 to vector<8x128xf32>
    %237 = arith.mulf %236, %204 : vector<8x128xf32>
    %238 = arith.addf %237, %231 : vector<8x128xf32>
    %cst_82 = arith.constant 1.000000e+00 : f32
    %239 = vector.broadcast %cst_82 : f32 to vector<8x128xf32>
    %240 = arith.mulf %235, %239 : vector<8x128xf32>
    %241 = arith.subf %238, %240 : vector<8x128xf32>
    %cst_83 = arith.constant 1.000000e+00 : f32
    %242 = vector.broadcast %cst_83 : f32 to vector<8x128xf32>
    %243 = arith.cmpf ogt, %241, %242 : vector<8x128xf32>
    %244 = arith.extui %243 : vector<8x128xi1> to vector<8x128xi32>
    %245 = arith.sitofp %244 : vector<8x128xi32> to vector<8x128xf32>
    %246 = arith.mulf %245, %227 : vector<8x128xf32>
    %247 = arith.mulf %241, %227 : vector<8x128xf32>
    %248 = vector.extract_strided_slice %246 {offsets = [0, 0], sizes = [4, 16], strides = [1, 1]} : vector<8x128xf32> to vector<4x16xf32>
    %249 = vector.extract_strided_slice %247 {offsets = [0, 0], sizes = [4, 16], strides = [1, 1]} : vector<8x128xf32> to vector<4x16xf32>
    %250 = arith.index_cast %c6_i32 : i32 to index
    %c0_84 = arith.constant 0 : index
    %c0_85 = arith.constant 0 : index
    %251 = vector.load %arg3[%250, %c0_84, %c0_85] : memref<8x4x16xf32, #tpu.memory_space<vmem>>, vector<1x4x16xf32>
    %252 = vector.shape_cast %251 : vector<1x4x16xf32> to vector<4x16xf32>
    %253 = vector.shape_cast %248 : vector<4x16xf32> to vector<1x4x16xf32>
    tpu.vector_store %arg3[%250, %c0_84, %c0_85], %253 {strides = array<i32>} : memref<8x4x16xf32, #tpu.memory_space<vmem>>, vector<1x4x16xf32>,
    %254 = arith.index_cast %c6_i32 : i32 to index
    %c0_86 = arith.constant 0 : index
    %c0_87 = arith.constant 0 : index
    %255 = vector.load %arg4[%254, %c0_86, %c0_87] : memref<8x4x16xf32, #tpu.memory_space<vmem>>, vector<1x4x16xf32>
    %256 = vector.shape_cast %255 : vector<1x4x16xf32> to vector<4x16xf32>
    %257 = vector.shape_cast %249 : vector<4x16xf32> to vector<1x4x16xf32>
    tpu.vector_store %arg4[%254, %c0_86, %c0_87], %257 {strides = array<i32>} : memref<8x4x16xf32, #tpu.memory_space<vmem>>, vector<1x4x16xf32>,
    %258 = vector.shape_cast %248 : vector<4x16xf32> to vector<1x4x16xf32>
    %cst_88 = arith.constant dense<0xFF800000> : vector<1xf32>
    %259 = vector.multi_reduction <maximumf>, %258, %cst_88 [1, 2] : vector<1x4x16xf32> to vector<1xf32>
    %260 = vector.shape_cast %259 : vector<1xf32> to vector<1x1x1xf32>
    %261 = vector.extract %260[0, 0, 0] : f32 from vector<1x1x1xf32>
    %cst_89 = arith.constant 1.000000e+00 : f32
    %262 = arith.subf %cst_89, %261 : f32
    %263 = vector.broadcast %262 : f32 to vector<8x128xf32>
    %264 = arith.mulf %227, %263 : vector<8x128xf32>
    %c7_i32 = arith.constant 7 : i32
    %c8_i32_90 = arith.constant 8 : i32
    %265 = arith.muli %c7_i32, %c8_i32_90 : i32
    %266 = tpu.assume_multiple %265, 8 : i32
    %267 = arith.index_cast %266 : i32 to index
    %c0_91 = arith.constant 0 : index
    %268 = vector.load %arg5[%267, %c0_91] : memref<64x128xf32, #tpu.memory_space<vmem>>, vector<8x128xf32>
    %cst_92 = arith.constant 1.000000e+00 : f32
    %269 = vector.broadcast %cst_92 : f32 to vector<8x128xf32>
    %270 = arith.cmpf ogt, %241, %269 : vector<8x128xf32>
    %271 = arith.extui %270 : vector<8x128xi1> to vector<8x128xi32>
    %272 = arith.sitofp %271 : vector<8x128xi32> to vector<8x128xf32>
    %cst_93 = arith.constant 0.899999976 : f32
    %273 = vector.broadcast %cst_93 : f32 to vector<8x128xf32>
    %274 = arith.mulf %273, %241 : vector<8x128xf32>
    %275 = arith.addf %274, %268 : vector<8x128xf32>
    %cst_94 = arith.constant 1.000000e+00 : f32
    %276 = vector.broadcast %cst_94 : f32 to vector<8x128xf32>
    %277 = arith.mulf %272, %276 : vector<8x128xf32>
    %278 = arith.subf %275, %277 : vector<8x128xf32>
    %cst_95 = arith.constant 1.000000e+00 : f32
    %279 = vector.broadcast %cst_95 : f32 to vector<8x128xf32>
    %280 = arith.cmpf ogt, %278, %279 : vector<8x128xf32>
    %281 = arith.extui %280 : vector<8x128xi1> to vector<8x128xi32>
    %282 = arith.sitofp %281 : vector<8x128xi32> to vector<8x128xf32>
    %283 = arith.mulf %282, %264 : vector<8x128xf32>
    %284 = arith.mulf %278, %264 : vector<8x128xf32>
    %285 = vector.extract_strided_slice %283 {offsets = [0, 0], sizes = [4, 16], strides = [1, 1]} : vector<8x128xf32> to vector<4x16xf32>
    %286 = vector.extract_strided_slice %284 {offsets = [0, 0], sizes = [4, 16], strides = [1, 1]} : vector<8x128xf32> to vector<4x16xf32>
    %287 = arith.index_cast %c7_i32 : i32 to index
    %c0_96 = arith.constant 0 : index
    %c0_97 = arith.constant 0 : index
    %288 = vector.load %arg3[%287, %c0_96, %c0_97] : memref<8x4x16xf32, #tpu.memory_space<vmem>>, vector<1x4x16xf32>
    %289 = vector.shape_cast %288 : vector<1x4x16xf32> to vector<4x16xf32>
    %290 = vector.shape_cast %285 : vector<4x16xf32> to vector<1x4x16xf32>
    tpu.vector_store %arg3[%287, %c0_96, %c0_97], %290 {strides = array<i32>} : memref<8x4x16xf32, #tpu.memory_space<vmem>>, vector<1x4x16xf32>,
    %291 = arith.index_cast %c7_i32 : i32 to index
    %c0_98 = arith.constant 0 : index
    %c0_99 = arith.constant 0 : index
    %292 = vector.load %arg4[%291, %c0_98, %c0_99] : memref<8x4x16xf32, #tpu.memory_space<vmem>>, vector<1x4x16xf32>
    %293 = vector.shape_cast %292 : vector<1x4x16xf32> to vector<4x16xf32>
    %294 = vector.shape_cast %286 : vector<4x16xf32> to vector<1x4x16xf32>
    tpu.vector_store %arg4[%291, %c0_98, %c0_99], %294 {strides = array<i32>} : memref<8x4x16xf32, #tpu.memory_space<vmem>>, vector<1x4x16xf32>,
    %295 = vector.shape_cast %285 : vector<4x16xf32> to vector<1x4x16xf32>
    %cst_100 = arith.constant dense<0xFF800000> : vector<1xf32>
    %296 = vector.multi_reduction <maximumf>, %295, %cst_100 [1, 2] : vector<1x4x16xf32> to vector<1xf32>
    %297 = vector.shape_cast %296 : vector<1xf32> to vector<1x1x1xf32>
    %298 = vector.extract %297[0, 0, 0] : f32 from vector<1x1x1xf32>
    %cst_101 = arith.constant 1.000000e+00 : f32
    %299 = arith.subf %cst_101, %298 : f32
    %300 = vector.broadcast %299 : f32 to vector<8x128xf32>
    %301 = arith.mulf %264, %300 : vector<8x128xf32>
    %c8_i32_102 = arith.constant 8 : i32
    return
  }
  func.func @transform_0(%arg0: i32) -> (i32, i32) {
    %c0_i32 = arith.constant 0 : i32
    %c0_i32_0 = arith.constant 0 : i32
    %c0_i32_1 = arith.constant 0 : i32
    return %c0_i32, %c0_i32_0 : i32, i32
  }
  func.func @transform_1(%arg0: i32) -> (i32, i32) {
    %c0_i32 = arith.constant 0 : i32
    %c0_i32_0 = arith.constant 0 : i32
    %c0_i32_1 = arith.constant 0 : i32
    return %c0_i32, %c0_i32_0 : i32, i32
  }
  func.func @transform_2(%arg0: i32) -> (i32, i32, i32) {
    %c0_i32 = arith.constant 0 : i32
    %c0_i32_0 = arith.constant 0 : i32
    %c0_i32_1 = arith.constant 0 : i32
    %c0_i32_2 = arith.constant 0 : i32
    return %c0_i32, %c0_i32_0, %c0_i32_1 : i32, i32, i32
  }
  func.func @transform_3(%arg0: i32) -> (i32, i32, i32) {
    %c0_i32 = arith.constant 0 : i32
    %c0_i32_0 = arith.constant 0 : i32
    %c0_i32_1 = arith.constant 0 : i32
    %c0_i32_2 = arith.constant 0 : i32
    return %c0_i32, %c0_i32_0, %c0_i32_1 : i32, i32, i32
  }
}

</mosaic_0001>

<llo_original>
// kernel: tpu_custom_call.1
$region0: #{tpu_custom_call.1}
  #allocation0 [shape = 'u32[]', space=smem, size = 0x4, offset = 0x4, fixed_abs, tag = 'smem constant byte address 0x4 - core index']
  #allocation1 [shape = 'u32[144,128]{1,0:T(1,128)}', space=vmem, size = 0x12000, scoped, tag = 'internal scratch']
  #allocation2 [shape = 'f32[64,128]{1,0:T(8,128)}', space=vmem, size = 0x8000, scoped, tag = 'scratch operand']
  %s0 = inlined_call_operand.hbm [shape: bf16[64,128], index: 0, kind: input, shape index: {}]
  %s1 = inlined_call_operand.hbm [shape: bf16[128,128], index: 1, kind: input, shape index: {}]
  %s2 = inlined_call_operand.hbm [shape: f32[8,4,16], index: 2, kind: output, shape index: {0}]
  %s3 = inlined_call_operand.hbm [shape: f32[8,4,16], index: 3, kind: output, shape index: {1}]
  %4 = xla_tuple %s2, %s3
  %s5 = sld [smem:[#allocation0]]
  $region34: #{tpu_custom_call.1} parent=0
    _
  %s7 = ssub.s32 1, %s5
  %s8 = scalar_select 0, %s7, %s5
  $region1: #{tpu_custom_call.1} parent=0
    #allocation3 [shape = 'u8[16384]{0}', space=vmem, size = 0x4000, scoped, tag = 'input window, operand 0, single buffered']
    #allocation4 [shape = 's32[1]{0}', space=sflag, size = 0x4, scoped, tag = 'scoped memory for tpu_custom_call.1']
    #allocation5 [shape = 's32[1]{0}', space=sflag, size = 0x4, scoped, tag = 'scoped memory for tpu_custom_call.1']
    #allocation6 [shape = 'u8[32768]{0}', space=vmem, size = 0x8000, scoped, tag = 'input window, operand 1, single buffered']
    #allocation7 [shape = 's32[1]{0}', space=sflag, size = 0x4, scoped, tag = 'scoped memory for tpu_custom_call.1']
    #allocation8 [shape = 'u8[16384]{0}', space=vmem, size = 0x4000, scoped, tag = 'output window, operand 0, single buffered']
    #allocation9 [shape = 'u8[16384]{0}', space=vmem, size = 0x4000, scoped, tag = 'output window, operand 1, single buffered']
    #allocation10 [shape = 's32[1]{0}', space=sflag, size = 0x4, scoped, tag = 'scoped memory for tpu_custom_call.1']
    %9 = vsyncpa [#allocation4], 0
    %10 = vsyncpa [#allocation7], 0
    %11 = vsyncpa [#allocation5], 0
    %12 = vsyncpa [#allocation10], 0
    // Predicated region
    $region2: #{tpu_custom_call.1} parent=1 // pred_check
      _
    $region3: #{tpu_custom_call.1} parent=1 // pred_check_branch
      %14 = sbr.rel (0) target = $region5
    $region4: #{tpu_custom_call.1} parent=1 // pred_region
      %s16 = ssub.s32 512, 512
      %17 = vsyncadd [#allocation4], %s16
      %s18 = sshll.u32 [#allocation3], 4
      %s19 = int_to_ptr.vmem [resolvable:$true] %s18
      %24 = dma.hbm_to_vmem [thread:$0]  %s0, 512, %s19, [#allocation4], 64, 64, 4
    $region5: #{tpu_custom_call.1} parent=1 // pred_fallthru
      _
    // Predicated region
    $region6: #{tpu_custom_call.1} parent=1 // pred_check
      _
    $region7: #{tpu_custom_call.1} parent=1 // pred_check_branch
      %26 = sbr.rel (0) target = $region9
    $region8: #{tpu_custom_call.1} parent=1 // pred_region
      %s28 = ssub.s32 1024, 1024
      %29 = vsyncadd [#allocation7], %s28
      %s30 = sshll.u32 [#allocation6], 4
      %s31 = int_to_ptr.vmem [resolvable:$true] %s30
      %36 = dma.hbm_to_vmem [thread:$0]  %s1, 1024, %s31, [#allocation7], 64, 64, 4
    $region9: #{tpu_custom_call.1} parent=1 // pred_fallthru
      _
    // Predicated region
    $region10: #{tpu_custom_call.1} parent=1 // pred_check
      _
    $region11: #{tpu_custom_call.1} parent=1 // pred_check_branch
      %38 = sbr.rel (0) target = $region13
    $region12: #{tpu_custom_call.1} parent=1 // pred_region
      %39 = dma.done [#allocation4], 512
    $region13: #{tpu_custom_call.1} parent=1 // pred_fallthru
      _
    // Predicated region
    $region14: #{tpu_custom_call.1} parent=1 // pred_check
      _
    $region15: #{tpu_custom_call.1} parent=1 // pred_check_branch
      %41 = sbr.rel (0) target = $region17
    $region16: #{tpu_custom_call.1} parent=1 // pred_region
      %42 = dma.done [#allocation7], 1024
    $region17: #{tpu_custom_call.1} parent=1 // pred_fallthru
      _
    %v44 = vld [vmem:[#allocation3] sm:$0xf]
    %v45 = vld [vmem:[#allocation3 + $0x4] sm:$0xf]
    %v46 = vld [vmem:[#allocation3 + $0x8] sm:$0xf]
    %v47 = vld [vmem:[#allocation3 + $0xc] sm:$0xf]
    %v48 = vld [vmem:[#allocation3 + $0x10] sm:$0xf]
    %v49 = vld [vmem:[#allocation3 + $0x14] sm:$0xf]
    %v50 = vld [vmem:[#allocation3 + $0x18] sm:$0xf]
    %v51 = vld [vmem:[#allocation3 + $0x1c] sm:$0xf]
    %v52 = vld [vmem:[#allocation6] sm:$0xf]
    %v53 = vld [vmem:[#allocation6 + $0x4] sm:$0xf]
    %v54 = vld [vmem:[#allocation6 + $0x8] sm:$0xf]
    %v55 = vld [vmem:[#allocation6 + $0xc] sm:$0xf]
    %v56 = vld [vmem:[#allocation6 + $0x10] sm:$0xf]
    %v57 = vld [vmem:[#allocation6 + $0x14] sm:$0xf]
    %v58 = vld [vmem:[#allocation6 + $0x18] sm:$0xf]
    %v59 = vld [vmem:[#allocation6 + $0x1c] sm:$0xf]
    %v60 = vld [vmem:[#allocation6 + $0x20] sm:$0xf]
    %v61 = vld [vmem:[#allocation6 + $0x24] sm:$0xf]
    %v62 = vld [vmem:[#allocation6 + $0x28] sm:$0xf]
    %v63 = vld [vmem:[#allocation6 + $0x2c] sm:$0xf]
    %v64 = vld [vmem:[#allocation6 + $0x30] sm:$0xf]
    %v65 = vld [vmem:[#allocation6 + $0x34] sm:$0xf]
    %v66 = vld [vmem:[#allocation6 + $0x38] sm:$0xf]
    %v67 = vld [vmem:[#allocation6 + $0x3c] sm:$0xf]
    %v76 = vunpack.c.l.b16 %v44
    %v77 = vunpack.c.l.b16 %v45
    %v78 = vunpack.c.l.b16 %v46
    %v79 = vunpack.c.l.b16 %v47
    %v80 = vunpack.c.l.b16 %v48
    %v81 = vunpack.c.l.b16 %v49
    %v82 = vunpack.c.l.b16 %v50
    %v83 = vunpack.c.l.b16 %v51
    %v84 = vpack.c.b16 %v77, %v76
    %v85 = vpack.c.b16 %v79, %v78
    %v86 = vpack.c.b16 %v81, %v80
    %v87 = vpack.c.b16 %v83, %v82
    %v108 = vunpack.c.l.b16 %v52
    %v109 = vunpack.c.l.b16 %v53
    %v110 = vunpack.c.l.b16 %v54
    %v111 = vunpack.c.l.b16 %v55
    %v112 = vunpack.c.l.b16 %v56
    %v113 = vunpack.c.l.b16 %v57
    %v114 = vunpack.c.l.b16 %v58
    %v115 = vunpack.c.l.b16 %v59
    %v116 = vunpack.c.l.b16 %v60
    %v117 = vunpack.c.l.b16 %v61
    %v118 = vunpack.c.l.b16 %v62
    %v119 = vunpack.c.l.b16 %v63
    %v120 = vunpack.c.l.b16 %v64
    %v121 = vunpack.c.l.b16 %v65
    %v122 = vunpack.c.l.b16 %v66
    %v123 = vunpack.c.l.b16 %v67
    %v124 = vpack.c.b16 %v109, %v108
    %v125 = vpack.c.b16 %v111, %v110
    %v126 = vpack.c.b16 %v113, %v112
    %v127 = vpack.c.b16 %v115, %v114
    %v128 = vpack.c.b16 %v117, %v116
    %v129 = vpack.c.b16 %v119, %v118
    %v130 = vpack.c.b16 %v121, %v120
    %v131 = vpack.c.b16 %v123, %v122
    %140 = vmatprep.subr.bf16.mxu0 0
    %141 = vmatpush1.bf16.msra.mxu0 %v131
    %142 = vmatprep.subr.bf16.mxu0 0
    %143 = vmatpush1.bf16.msra.mxu0 %v130
    %144 = vmatprep.subr.bf16.mxu0 0
    %145 = vmatpush1.bf16.msra.mxu0 %v129
    %146 = vmatprep.subr.bf16.mxu0 0
    %147 = vmatpush1.bf16.msra.mxu0 %v128
    %148 = vmatprep.subr.bf16.mxu0 0
    %149 = vmatpush1.bf16.msra.mxu0 %v127
    %150 = vmatprep.subr.bf16.mxu0 0
    %151 = vmatpush1.bf16.msra.mxu0 %v126
    %152 = vmatprep.subr.bf16.mxu0 0
    %153 = vmatpush1.bf16.msra.mxu0 %v125
    %154 = vmatprep.subr.bf16.mxu0 0
    %155 = vmatpush1.bf16.msra.mxu0 %v124
    %156 = vmatprep.subr.bf16.mxu0 0
    %157 = vmatpush2.bf16.msra.mxu0 0
    %158 = vmatprep.subr.bf16.mxu0 0
    %159 = vmatpush2.bf16.msra.mxu0 0
    %160 = vmatprep.subr.bf16.mxu0 0
    %161 = vmatpush2.bf16.msra.mxu0 0
    %162 = vmatprep.subr.bf16.mxu0 0
    %163 = vmatpush2.bf16.msra.mxu0 0
    %164 = vmatprep.subr.bf16.mxu0 0
    %165 = vmatpush2.bf16.msra.mxu0 0
    %166 = vmatprep.subr.bf16.mxu0 0
    %167 = vmatpush2.bf16.msra.mxu0 0
    %168 = vmatprep.subr.bf16.mxu0 0
    %169 = vmatpush2.bf16.msra.mxu0 0
    %170 = vmatprep.subr.bf16.mxu0 0
    %171 = vmatpush2.bf16.msra.mxu0 0
    %172 = vmatprep.mubr.bf16.mxu0 0
    %173 = vmatmul.mubr.bf16.gmra.mxu0 %v84
    %v174 = vpop.f32.mrf.mxu0
    %v175 = vadd.f32 0.0, %v174
    %v176 = vpop.f32.mrf.mxu0
    %v177 = vpop.f32.mrf.mxu0
    %v178 = vadd.f32 0.0, %v177
    %v179 = vpop.f32.mrf.mxu0
    %180 = vmatprep.mubr.bf16.mxu0 0
    %181 = vmatmul.mubr.bf16.gmra.mxu0 %v85
    %v182 = vpop.f32.mrf.mxu0
    %v183 = vadd.f32 0.0, %v182
    %v184 = vpop.f32.mrf.mxu0
    %v185 = vpop.f32.mrf.mxu0
    %v186 = vadd.f32 0.0, %v185
    %v187 = vpop.f32.mrf.mxu0
    %188 = vmatprep.mubr.bf16.mxu0 0
    %189 = vmatmul.mubr.bf16.gmra.mxu0 %v86
    %v190 = vpop.f32.mrf.mxu0
    %v191 = vadd.f32 0.0, %v190
    %v192 = vpop.f32.mrf.mxu0
    %v193 = vpop.f32.mrf.mxu0
    %v194 = vadd.f32 0.0, %v193
    %v195 = vpop.f32.mrf.mxu0
    %196 = vmatprep.mubr.bf16.mxu0 0
    %197 = vmatmul.mubr.bf16.gmra.mxu0 %v87
    %v198 = vpop.f32.mrf.mxu0
    %v199 = vadd.f32 0.0, %v198
    %v200 = vpop.f32.mrf.mxu0
    %v201 = vpop.f32.mrf.mxu0
    %v202 = vadd.f32 0.0, %v201
    %v203 = vpop.f32.mrf.mxu0
    %204 = vdwg.mxu0
    %205 = vst [vmem:[#allocation2] sm:$0xff] %v175
    %206 = vst [vmem:[#allocation2 + $0x8] sm:$0xff] %v178
    %207 = vst [vmem:[#allocation2 + $0x10] sm:$0xff] %v183
    %208 = vst [vmem:[#allocation2 + $0x18] sm:$0xff] %v186
    %209 = vst [vmem:[#allocation2 + $0x20] sm:$0xff] %v191
    %210 = vst [vmem:[#allocation2 + $0x28] sm:$0xff] %v194
    %211 = vst [vmem:[#allocation2 + $0x30] sm:$0xff] %v199
    %212 = vst [vmem:[#allocation2 + $0x38] sm:$0xff] %v202
    %v213 = vld [vmem:[#allocation2] sm:$0xff]
    %vm214 = vcmp.gt.f32.partialorder 0.0, 1.0
    %v215 = vsel %vm214, 1, 0
    %v216 = vcvt.s32.f32 %v215
    %v217 = vadd.f32 %v213, 0.0
    %v218 = vsub.f32 %v217, %v216
    %vm219 = vcmp.gt.f32.partialorder %v218, 1.0
    %v220 = vsel %vm219, 1, 0
    %v221 = vcvt.s32.f32 %v220
    %vm222 = vcmask 125952
    %223 = vst.msk [vmem:[#allocation8] sm:$0xf] %vm222, %v221
    %224 = vst.msk [vmem:[#allocation9] sm:$0xf] %vm222, %v218
    %v225 = vsel %vm222, %v221, -inf
    %226 = vmax.xlane.f32.xlu0 %v225
    %v227 = vpop.xlane.xlu0 %226
    %v228 = vrot.slane %v227, 4
    %v229 = vmax.f32 %v227, %v228
    %v230 = vrot.slane %v229, 2
    %v231 = vmax.f32 %v229, %v230
    %v232 = vrot.slane %v231, 1
    %v233 = vmax.f32 %v231, %v232
    %s234 = vtos %v233
    %s235 = ssub.f32 1.0, %s234
    %v236 = vstv %s235
    %s237 = scalar_lea.vmem [#allocation2], 8
    %v238 = vld [vmem:[%s237] sm:$0xff]
    %v239 = vmul.f32 %v218, 0.9
    %v240 = vadd.f32 %v239, %v238
    %v241 = vsub.f32 %v240, %v221
    %vm242 = vcmp.gt.f32.partialorder %v241, 1.0
    %v243 = vsel %vm242, 1, 0
    %v244 = vcvt.s32.f32 %v243
    %v245 = vmul.f32 %v244, %v236
    %v246 = vmul.f32 %v241, %v236
    %s247 = scalar_lea.vmem [#allocation8], 4
    %248 = vst.msk [vmem:[%s247] sm:$0xf] %vm222, %v245
    %s249 = scalar_lea.vmem [#allocation9], 4
    %250 = vst.msk [vmem:[%s249] sm:$0xf] %vm222, %v246
    %v251 = vsel %vm222, %v245, -inf
    %252 = vmax.xlane.f32.xlu0 %v251
    %v253 = vpop.xlane.xlu0 %252
    %v254 = vrot.slane %v253, 4
    %v255 = vmax.f32 %v253, %v254
    %v256 = vrot.slane %v255, 2
    %v257 = vmax.f32 %v255, %v256
    %v258 = vrot.slane %v257, 1
    %v259 = vmax.f32 %v257, %v258
    %s260 = vtos %v259
    %s261 = ssub.f32 1.0, %s260
    %v262 = vstv %s261
    %v263 = vmul.f32 %v236, %v262
    %s264 = scalar_lea.vmem [#allocation2], 16
    %v265 = vld [vmem:[%s264] sm:$0xff]
    %v266 = vmul.f32 %v241, 0.9
    %v267 = vadd.f32 %v266, %v265
    %v268 = vsub.f32 %v267, %v244
    %vm269 = vcmp.gt.f32.partialorder %v268, 1.0
    %v270 = vsel %vm269, 1, 0
    %v271 = vcvt.s32.f32 %v270
    %v272 = vmul.f32 %v271, %v263
    %v273 = vmul.f32 %v268, %v263
    %s274 = scalar_lea.vmem [#allocation8], 8
    %275 = vst.msk [vmem:[%s274] sm:$0xf] %vm222, %v272
    %s276 = scalar_lea.vmem [#allocation9], 8
    %277 = vst.msk [vmem:[%s276] sm:$0xf] %vm222, %v273
    %v278 = vsel %vm222, %v272, -inf
    %279 = vmax.xlane.f32.xlu0 %v278
    %v280 = vpop.xlane.xlu0 %279
    %v281 = vrot.slane %v280, 4
    %v282 = vmax.f32 %v280, %v281
    %v283 = vrot.slane %v282, 2
    %v284 = vmax.f32 %v282, %v283
    %v285 = vrot.slane %v284, 1
    %v286 = vmax.f32 %v284, %v285
    %s287 = vtos %v286
    %s288 = ssub.f32 1.0, %s287
    %v289 = vstv %s288
    %v290 = vmul.f32 %v263, %v289
    %s291 = scalar_lea.vmem [#allocation2], 24
    %v292 = vld [vmem:[%s291] sm:$0xff]
    %v293 = vmul.f32 %v268, 0.9
    %v294 = vadd.f32 %v293, %v292
    %v295 = vsub.f32 %v294, %v271
    %vm296 = vcmp.gt.f32.partialorder %v295, 1.0
    %v297 = vsel %vm296, 1, 0
    %v298 = vcvt.s32.f32 %v297
    %v299 = vmul.f32 %v298, %v290
    %v300 = vmul.f32 %v295, %v290
    %s301 = scalar_lea.vmem [#allocation8], 12
    %302 = vst.msk [vmem:[%s301] sm:$0xf] %vm222, %v299
    %s303 = scalar_lea.vmem [#allocation9], 12
    %304 = vst.msk [vmem:[%s303] sm:$0xf] %vm222, %v300
    %v305 = vsel %vm222, %v299, -inf
    %306 = vmax.xlane.f32.xlu0 %v305
    %v307 = vpop.xlane.xlu0 %306
    %v308 = vrot.slane %v307, 4
    %v309 = vmax.f32 %v307, %v308
    %v310 = vrot.slane %v309, 2
    %v311 = vmax.f32 %v309, %v310
    %v312 = vrot.slane %v311, 1
    %v313 = vmax.f32 %v311, %v312
    %s314 = vtos %v313
    %s315 = ssub.f32 1.0, %s314
    %v316 = vstv %s315
    %v317 = vmul.f32 %v290, %v316
    %s318 = scalar_lea.vmem [#allocation2], 32
    %v319 = vld [vmem:[%s318] sm:$0xff]
    %v320 = vmul.f32 %v295, 0.9
    %v321 = vadd.f32 %v320, %v319
    %v322 = vsub.f32 %v321, %v298
    %vm323 = vcmp.gt.f32.partialorder %v322, 1.0
    %v324 = vsel %vm323, 1, 0
    %v325 = vcvt.s32.f32 %v324
    %v326 = vmul.f32 %v325, %v317
    %v327 = vmul.f32 %v322, %v317
    %s328 = scalar_lea.vmem [#allocation8], 16
    %329 = vst.msk [vmem:[%s328] sm:$0xf] %vm222, %v326
    %s330 = scalar_lea.vmem [#allocation9], 16
    %331 = vst.msk [vmem:[%s330] sm:$0xf] %vm222, %v327
    %v332 = vsel %vm222, %v326, -inf
    %333 = vmax.xlane.f32.xlu0 %v332
    %v334 = vpop.xlane.xlu0 %333
    %v335 = vrot.slane %v334, 4
    %v336 = vmax.f32 %v334, %v335
    %v337 = vrot.slane %v336, 2
    %v338 = vmax.f32 %v336, %v337
    %v339 = vrot.slane %v338, 1
    %v340 = vmax.f32 %v338, %v339
    %s341 = vtos %v340
    %s342 = ssub.f32 1.0, %s341
    %v343 = vstv %s342
    %v344 = vmul.f32 %v317, %v343
    %s345 = scalar_lea.vmem [#allocation2], 40
    %v346 = vld [vmem:[%s345] sm:$0xff]
    %v347 = vmul.f32 %v322, 0.9
    %v348 = vadd.f32 %v347, %v346
    %v349 = vsub.f32 %v348, %v325
    %vm350 = vcmp.gt.f32.partialorder %v349, 1.0
    %v351 = vsel %vm350, 1, 0
    %v352 = vcvt.s32.f32 %v351
    %v353 = vmul.f32 %v352, %v344
    %v354 = vmul.f32 %v349, %v344
    %s355 = scalar_lea.vmem [#allocation8], 20
    %356 = vst.msk [vmem:[%s355] sm:$0xf] %vm222, %v353
    %s357 = scalar_lea.vmem [#allocation9], 20
    %358 = vst.msk [vmem:[%s357] sm:$0xf] %vm222, %v354
    %v359 = vsel %vm222, %v353, -inf
    %360 = vmax.xlane.f32.xlu0 %v359
    %v361 = vpop.xlane.xlu0 %360
    %v362 = vrot.slane %v361, 4
    %v363 = vmax.f32 %v361, %v362
    %v364 = vrot.slane %v363, 2
    %v365 = vmax.f32 %v363, %v364
    %v366 = vrot.slane %v365, 1
    %v367 = vmax.f32 %v365, %v366
    %s368 = vtos %v367
    %s369 = ssub.f32 1.0, %s368
    %v370 = vstv %s369
    %v371 = vmul.f32 %v344, %v370
    %s372 = scalar_lea.vmem [#allocation2], 48
    %v373 = vld [vmem:[%s372] sm:$0xff]
    %v374 = vmul.f32 %v349, 0.9
    %v375 = vadd.f32 %v374, %v373
    %v376 = vsub.f32 %v375, %v352
    %vm377 = vcmp.gt.f32.partialorder %v376, 1.0
    %v378 = vsel %vm377, 1, 0
    %v379 = vcvt.s32.f32 %v378
    %v380 = vmul.f32 %v379, %v371
    %v381 = vmul.f32 %v376, %v371
    %s382 = scalar_lea.vmem [#allocation8], 24
    %383 = vst.msk [vmem:[%s382] sm:$0xf] %vm222, %v380
    %s384 = scalar_lea.vmem [#allocation9], 24
    %385 = vst.msk [vmem:[%s384] sm:$0xf] %vm222, %v381
    %v386 = vsel %vm222, %v380, -inf
    %387 = vmax.xlane.f32.xlu0 %v386
    %v388 = vpop.xlane.xlu0 %387
    %v389 = vrot.slane %v388, 4
    %v390 = vmax.f32 %v388, %v389
    %v391 = vrot.slane %v390, 2
    %v392 = vmax.f32 %v390, %v391
    %v393 = vrot.slane %v392, 1
    %v394 = vmax.f32 %v392, %v393
    %s395 = vtos %v394
    %s396 = ssub.f32 1.0, %s395
    %v397 = vstv %s396
    %v398 = vmul.f32 %v371, %v397
    %s399 = scalar_lea.vmem [#allocation2], 56
    %v400 = vld [vmem:[%s399] sm:$0xff]
    %v401 = vmul.f32 %v376, 0.9
    %v402 = vadd.f32 %v401, %v400
    %v403 = vsub.f32 %v402, %v379
    %vm404 = vcmp.gt.f32.partialorder %v403, 1.0
    %v405 = vsel %vm404, 1, 0
    %v406 = vcvt.s32.f32 %v405
    %v407 = vmul.f32 %v406, %v398
    %v408 = vmul.f32 %v403, %v398
    %s409 = scalar_lea.vmem [#allocation8], 28
    %410 = vst.msk [vmem:[%s409] sm:$0xf] %vm222, %v407
    %s411 = scalar_lea.vmem [#allocation9], 28
    %412 = vst.msk [vmem:[%s411] sm:$0xf] %vm222, %v408
    // Predicated region
    $region18: #{tpu_custom_call.1} parent=1 // pred_check
      _
    $region19: #{tpu_custom_call.1} parent=1 // pred_check_branch
      %414 = sbr.rel (0) target = $region21
    $region20: #{tpu_custom_call.1} parent=1 // pred_region
      %s416 = ssub.s32 512, 512
      %417 = vsyncadd [#allocation5], %s416
      %s418 = sshll.u32 [#allocation8], 4
      %s419 = int_to_ptr.vmem [resolvable:$true] %s418
      %424 = dma.vmem_to_hbm [thread:$0]  %s419, 512, %s2, [#allocation5], 64, 64, 4
    $region21: #{tpu_custom_call.1} parent=1 // pred_fallthru
      _
    // Predicated region
    $region22: #{tpu_custom_call.1} parent=1 // pred_check
      _
    $region23: #{tpu_custom_call.1} parent=1 // pred_check_branch
      %426 = sbr.rel (0) target = $region25
    $region24: #{tpu_custom_call.1} parent=1 // pred_region
      %s428 = ssub.s32 512, 512
      %429 = vsyncadd [#allocation10], %s428
      %s430 = sshll.u32 [#allocation9], 4
      %s431 = int_to_ptr.vmem [resolvable:$true] %s430
      %436 = dma.vmem_to_hbm [thread:$0]  %s431, 512, %s3, [#allocation10], 64, 64, 4
    $region25: #{tpu_custom_call.1} parent=1 // pred_fallthru
      _
    // Predicated region
    $region26: #{tpu_custom_call.1} parent=1 // pred_check
      _
    $region27: #{tpu_custom_call.1} parent=1 // pred_check_branch
      %438 = sbr.rel (0) target = $region29
    $region28: #{tpu_custom_call.1} parent=1 // pred_region
      %439 = dma.done [#allocation5], 512
    $region29: #{tpu_custom_call.1} parent=1 // pred_fallthru
      _
    // Predicated region
    $region30: #{tpu_custom_call.1} parent=1 // pred_check
      _
    $region31: #{tpu_custom_call.1} parent=1 // pred_check_branch
      %441 = sbr.rel (0) target = $region33
    $region32: #{tpu_custom_call.1} parent=1 // pred_region
      %442 = dma.done [#allocation10], 512
    $region33: #{tpu_custom_call.1} parent=1 // pred_fallthru
      _
    %443 = vsyncpa [#allocation4], 1
    %444 = vsyncpa [#allocation7], 1
    %445 = vsyncpa [#allocation5], 1
    %446 = vsyncpa [#allocation10], 1

</llo_original>
